<compile_context>
chip_gen: v7x
topology: tpu7x:2x2x1
jax: 0.10.0
libtpu: 0.0.40
codegen_flags: <defaults>
</compile_context>

<pallas_src>
import jax
import jax.numpy as jnp
from jax.experimental import pallas as pl
from jax.experimental.pallas import tpu as pltpu


# --------------------------------------------------------------------------- #
# Small helpers
# --------------------------------------------------------------------------- #
def _cdiv(a, b):
    return (a + b - 1) // b


def _round_up(x, m):
    return ((x + m - 1) // m) * m


# --------------------------------------------------------------------------- #
# Kernels
# --------------------------------------------------------------------------- #
def _log_softmax_rows(y):
    """Numerically stable log-softmax over the last axis (f32 in, f32 out)."""
    m = jnp.max(y, axis=-1, keepdims=True)
    s = y - m
    lse = jnp.log(jnp.sum(jnp.exp(s), axis=-1, keepdims=True))
    return s - lse


def _fused_dense_kernel(x_ref, w_ref, o_ref):
    # x_ref: (TB, L) activations in the caller's dtype.  Cast to the weight's
    # compute dtype here (VPU) so the HBM read stays a single f32 stream — no
    # separate wrapper-side astype pass.
    x = x_ref[...].astype(w_ref.dtype)
    y = jnp.dot(x, w_ref[...], preferred_element_type=jnp.float32)
    o_ref[...] = _log_softmax_rows(y).astype(o_ref.dtype)


def _fused_index_kernel(idx_ref, w_ref, o_ref):
    # idx_ref: (TB, 1) int32 token ids.  Builds the one-hot in-register so no
    # dense, mostly-zero activation matrix is ever streamed from HBM.
    tb, L = o_ref.shape
    idx = idx_ref[...]                                        # (TB, 1)
    cols = jax.lax.broadcasted_iota(jnp.int32, (tb, L), 1)    # (TB, L)
    one_hot = (cols == idx).astype(w_ref.dtype)
    y = jnp.dot(one_hot, w_ref[...], preferred_element_type=jnp.float32)
    o_ref[...] = _log_softmax_rows(y).astype(o_ref.dtype)


# --------------------------------------------------------------------------- #
# Weight fusion (done ONCE for frozen weights; hoisted out of the forward)
# --------------------------------------------------------------------------- #
def fuse_word2vec_weights(w1, w2, compute_dtype=jnp.bfloat16):
    # PyTorch layout: w1 = FC1.weight (EMB, L), w2 = FC2.weight (L, EMB).
    # y = (x @ w1.T) @ w2.T = x @ (w1.T @ w2.T) = x @ W, with W: (L, L).
    # TODO(synk): for large LENGTH (>~2K) this L x L fusion stops scaling
    # (weight grows as L^2, 64x the unfused FLOPs, and exhausts v7x's 64 MiB
    # VMEM first); switch to an embedding-row gather + FC2 tiled over the
    # vocab axis instead.
    W = jnp.dot(w1.T.astype(jnp.float32), w2.T.astype(jnp.float32))
    return W.astype(compute_dtype)


# --------------------------------------------------------------------------- #
# Tiling
# --------------------------------------------------------------------------- #
_VMEM_BUDGET = 12 * 1024 * 1024   # comfortably under v5e's 16 MiB scoped default
_MAX_TILE_B = 8192                # plenty to amortise ~0.35 us per grid step


def _pick_batch_tile(batch, per_row_bytes, resident_bytes):
    """Largest sublane-aligned batch tile fitting the VMEM budget.

    `per_row_bytes` must already include the x2 double-buffer factor for the
    pipelined (batch-tiled) operands; `resident_bytes` is the fused weight's
    footprint (constant index_map, but the pipeline still reserves 2 buffers).
    """
    avail = max(_VMEM_BUDGET - resident_bytes, per_row_bytes * 8)
    tb = min(_MAX_TILE_B, avail // per_row_bytes, _round_up(max(batch, 1), 8))
    tb = max(8, (tb // 8) * 8)
    grid = _cdiv(batch, tb)
    # v7x megacore: split across the two TensorCores only when each half has
    # real work (>=256 rows).  On v5e/v6e (1 TC) and for small batches a single
    # big tile is strictly better (no extra per-step overhead).
    if grid == 1 and batch >= 512:
        tb = max(8, _round_up(_cdiv(batch, 2), 8))
        grid = _cdiv(batch, tb)
    return tb, grid


# --------------------------------------------------------------------------- #
# Forward wrappers
# --------------------------------------------------------------------------- #
def word2vec_forward(one_hot, w_fused, *, out_dtype=jnp.float32):
    """Dense path: faithful to the module's forward(one_hot) for any input."""
    B, L = one_hot.shape
    assert w_fused.shape == (L, L)

    in_bytes = jnp.dtype(one_hot.dtype).itemsize
    out_bytes = jnp.dtype(out_dtype).itemsize
    per_row = 2 * L * (in_bytes + out_bytes)                  # double-buffered
    resident = 2 * L * L * jnp.dtype(w_fused.dtype).itemsize  # fused weight
    tb, grid_b = _pick_batch_tile(B, per_row, resident)

    return pl.pallas_call(
        _fused_dense_kernel,
        out_shape=jax.ShapeDtypeStruct((B, L), out_dtype),
        grid_spec=pltpu.PrefetchScalarGridSpec(
            num_scalar_prefetch=0,
            grid=(grid_b,),
            in_specs=[
                pl.BlockSpec((tb, L), lambda i: (i, 0)),  # activations, tiled
                pl.BlockSpec((L, L), lambda i: (0, 0)),   # fused weight, resident
            ],
            out_specs=pl.BlockSpec((tb, L), lambda i: (i, 0)),
        ),
        compiler_params=pltpu.CompilerParams(
            dimension_semantics=("parallel",)),
    )(one_hot, w_fused)


def word2vec_forward_from_indices(idx, w_fused, *, out_dtype=jnp.float32):
    """Index path: identical result to the dense path when the input is a true
    one-hot of `idx`, but reads B int32 ids instead of B*LENGTH floats.
    Pass out_dtype=jnp.bfloat16 to halve the (dominant) output writeback if
    downstream math tolerates ~0.4% relative error in log-probs."""
    L = w_fused.shape[0]
    B = idx.shape[0]
    idx2d = idx.astype(jnp.int32).reshape(B, 1)

    out_bytes = jnp.dtype(out_dtype).itemsize
    per_row = 2 * (4 + L * out_bytes)                         # double-buffered
    resident = 2 * L * L * jnp.dtype(w_fused.dtype).itemsize
    tb, grid_b = _pick_batch_tile(B, per_row, resident)

    return pl.pallas_call(
        _fused_index_kernel,
        out_shape=jax.ShapeDtypeStruct((B, L), out_dtype),
        grid_spec=pltpu.PrefetchScalarGridSpec(
            num_scalar_prefetch=0,
            grid=(grid_b,),
            in_specs=[
                pl.BlockSpec((tb, 1), lambda i: (i, 0)),  # token ids, tiled
                pl.BlockSpec((L, L), lambda i: (0, 0)),   # fused weight, resident
            ],
            out_specs=pl.BlockSpec((tb, L), lambda i: (i, 0)),
        ),
        compiler_params=pltpu.CompilerParams(
            dimension_semantics=("parallel",)),
    )(idx2d, w_fused)


def xavier_normal(key, fan_out, fan_in, dtype=jnp.float32):
    # matches torch.nn.init.xavier_normal_ on a (out, in) weight
    std = jnp.sqrt(2.0 / (fan_in + fan_out)).astype(dtype)
    return jax.random.normal(key, (fan_out, fan_in), dtype) * std


# --------------------------------------------------------------------------- #
# Demo / correctness check
# --------------------------------------------------------------------------- #
if __name__ == "__main__":
    LENGTH = 128          # vocabulary size (lane-aligned)
    EMBED = 32            # embedding size
    BATCH = 16            # small demo batch

    key = jax.random.PRNGKey(0)
    k_w1, k_w2, k_x = jax.random.split(key, 3)

    # PyTorch Linear stores weight as (out_features, in_features).
    w1 = xavier_normal(k_w1, EMBED, LENGTH)    # FC1.weight  (EMB, LENGTH)
    w2 = xavier_normal(k_w2, LENGTH, EMBED)    # FC2.weight  (LENGTH, EMB)

    # Fuse the frozen weights ONCE, outside the per-batch forward.
    W = fuse_word2vec_weights(w1, w2)          # (LENGTH, LENGTH) bf16

    idx = jax.random.randint(k_x, (BATCH,), 0, LENGTH)
    one_hot = jax.nn.one_hot(idx, LENGTH, dtype=jnp.float32)   # (BATCH, LENGTH)

    def check(out, oh, nrows):
        assert out.shape == (nrows, LENGTH)
        o32 = out.astype(jnp.float32)
        # Reference 1: same math as the kernels (bf16 fused weight, f32 acc).
        ref_matched = jax.nn.log_softmax(
            jnp.dot(oh.astype(jnp.bfloat16), W,
                    preferred_element_type=jnp.float32), axis=-1)
        # Reference 2: exact module semantics (unfused, f32); loose tolerance
        # absorbs the bf16 weight rounding.
        ref_module = jax.nn.log_softmax((oh @ w1.T) @ w2.T, axis=-1)
        assert jnp.allclose(o32, ref_matched, atol=2e-3, rtol=2e-3), \
            "mismatch vs matched (bf16) reference"
        assert jnp.allclose(o32, ref_module, atol=5e-2, rtol=5e-2), \
            "mismatch vs f32 module reference"

    out_dense = jax.block_until_ready(word2vec_forward(one_hot, W))
    out_index = jax.block_until_ready(word2vec_forward_from_indices(idx, W))
    check(out_dense, one_hot, BATCH)
    check(out_index, one_hot, BATCH)

    # Ragged batch (13 rows): exercises the cdiv grid + masked partial last
    # block (no jnp.pad HBM pass on the dense activations).
    B2 = 13
    out_dense2 = jax.block_until_ready(word2vec_forward(one_hot[:B2], W))
    out_index2 = jax.block_until_ready(
        word2vec_forward_from_indices(idx[:B2], W))
    check(out_dense2, one_hot[:B2], B2)
    check(out_index2, one_hot[:B2], B2)

    print("KERNEL_OK")
</pallas_src>

<mosaic_0001>
module attributes {stable_mosaic.version = 11 : i64} {
  func.func @_fused_dense_kernel(%arg0: i32, %arg1: memref<16x128xf32, #tpu.memory_space<vmem>>, %arg2: memref<128x128xbf16, #tpu.memory_space<vmem>>, %arg3: memref<16x128xf32, #tpu.memory_space<vmem>>) attributes {dimension_semantics = [#tpu.dimension_semantics<parallel>], iteration_bounds = array<i64: 1>, scalar_prefetch = 0 : i64, scratch_operands = 0 : i64, tpu.core_type = #tpu.core_type<tc>, window_params = [{transform_indices = @transform_0, window_bounds = array<i64: 16, 128>}, {pipeline_mode = #tpu.pipeline_mode<synchronous>, transform_indices = @transform_1, window_bounds = array<i64: 128, 128>}, {transform_indices = @transform_2, window_bounds = array<i64: 16, 128>}]} {
    %c0 = arith.constant 0 : index
    %c0_0 = arith.constant 0 : index
    %0 = vector.load %arg1[%c0, %c0_0] : memref<16x128xf32, #tpu.memory_space<vmem>>, vector<16x128xf32>
    %1 = arith.truncf %0 : vector<16x128xf32> to vector<16x128xbf16>
    %c0_1 = arith.constant 0 : index
    %c0_2 = arith.constant 0 : index
    %2 = vector.load %arg2[%c0_1, %c0_2] : memref<128x128xbf16, #tpu.memory_space<vmem>>, vector<128x128xbf16>
    %cst = arith.constant dense<0.000000e+00> : vector<16x128xf32>
    %3 = tpu.matmul %1, %2, %cst {dimension_numbers = #tpu.dot_dimension_numbers<[1], [0], [0], [1], [0, 0, 1, 1], [], []>} : vector<16x128xbf16>, vector<128x128xbf16>, vector<16x128xf32> -> vector<16x128xf32>
    %cst_3 = arith.constant dense<0xFF800000> : vector<16xf32>
    %4 = vector.multi_reduction <maximumf>, %3, %cst_3 [1] : vector<16x128xf32> to vector<16xf32>
    %5 = vector.shape_cast %4 : vector<16xf32> to vector<16x1xf32>
    %6 = vector.broadcast %5 : vector<16x1xf32> to vector<16x128xf32>
    %7 = arith.subf %3, %6 : vector<16x128xf32>
    %8 = math.exp %7 : vector<16x128xf32>
    %cst_4 = arith.constant dense<0.000000e+00> : vector<16xf32>
    %9 = vector.multi_reduction <add>, %8, %cst_4 [1] : vector<16x128xf32> to vector<16xf32>
    %10 = vector.shape_cast %9 : vector<16xf32> to vector<16x1xf32>
    %11 = math.log %10 : vector<16x1xf32>
    %12 = vector.broadcast %11 : vector<16x1xf32> to vector<16x128xf32>
    %13 = arith.subf %7, %12 : vector<16x128xf32>
    %c0_5 = arith.constant 0 : index
    %c0_6 = arith.constant 0 : index
    %14 = vector.load %arg3[%c0_5, %c0_6] : memref<16x128xf32, #tpu.memory_space<vmem>>, vector<16x128xf32>
    tpu.vector_store %arg3[%c0_5, %c0_6], %13 {strides = array<i32>} : memref<16x128xf32, #tpu.memory_space<vmem>>, vector<16x128xf32>,
    return
  }
  func.func @transform_0(%arg0: i32) -> (i32, i32) {
    %c0_i32 = arith.constant 0 : i32
    %c0_i32_0 = arith.constant 0 : i32
    return %arg0, %c0_i32 : i32, i32
  }
  func.func @transform_1(%arg0: i32) -> (i32, i32) {
    %c0_i32 = arith.constant 0 : i32
    %c0_i32_0 = arith.constant 0 : i32
    %c0_i32_1 = arith.constant 0 : i32
    return %c0_i32, %c0_i32_0 : i32, i32
  }
  func.func @transform_2(%arg0: i32) -> (i32, i32) {
    %c0_i32 = arith.constant 0 : i32
    %c0_i32_0 = arith.constant 0 : i32
    return %arg0, %c0_i32 : i32, i32
  }
}

</mosaic_0001>

<llo_original>
// kernel: tpu_custom_call.1
$region0: #{tpu_custom_call.1}
  #allocation0 [shape = 'u32[]', space=smem, size = 0x4, offset = 0x4, fixed_abs, tag = 'smem constant byte address 0x4 - core index']
  #allocation1 [shape = 'u32[144,128]{1,0:T(1,128)}', space=vmem, size = 0x12000, scoped, tag = 'internal scratch']
  %s0 = inlined_call_operand.hbm [shape: f32[16,128], index: 0, kind: input, shape index: {}]
  %s1 = inlined_call_operand.hbm [shape: bf16[128,128], index: 1, kind: input, shape index: {}]
  %s2 = inlined_call_operand.hbm [shape: f32[16,128], index: 2, kind: output, shape index: {}]
  %s3 = sld [smem:[#allocation0]]
  $region26: #{tpu_custom_call.1} parent=0
    _
  %s5 = ssub.s32 1, %s3
  %s6 = scalar_select 0, %s5, %s3
  $region1: #{tpu_custom_call.1} parent=0
    #allocation2 [shape = 'u8[8192]{0}', space=vmem, size = 0x2000, scoped, tag = 'input window, operand 0, single buffered']
    #allocation3 [shape = 's32[1]{0}', space=sflag, size = 0x4, scoped, tag = 'scoped memory for tpu_custom_call.1']
    #allocation4 [shape = 's32[1]{0}', space=sflag, size = 0x4, scoped, tag = 'scoped memory for tpu_custom_call.1']
    #allocation5 [shape = 'u8[32768]{0}', space=vmem, size = 0x8000, scoped, tag = 'input window, operand 1, single buffered']
    #allocation6 [shape = 's32[1]{0}', space=sflag, size = 0x4, scoped, tag = 'scoped memory for tpu_custom_call.1']
    #allocation7 [shape = 'u8[8192]{0}', space=vmem, size = 0x2000, scoped, tag = 'output window, operand 0, single buffered']
    %7 = vsyncpa [#allocation3], 0
    %8 = vsyncpa [#allocation6], 0
    %9 = vsyncpa [#allocation4], 0
    // Predicated region
    $region2: #{tpu_custom_call.1} parent=1 // pred_check
      _
    $region3: #{tpu_custom_call.1} parent=1 // pred_check_branch
      %11 = sbr.rel (0) target = $region5
    $region4: #{tpu_custom_call.1} parent=1 // pred_region
      %s13 = ssub.s32 256, 256
      %14 = vsyncadd [#allocation3], %s13
      %s15 = sshll.u32 [#allocation2], 4
      %s16 = int_to_ptr.vmem [resolvable:$true] %s15
      %21 = dma.hbm_to_vmem [thread:$0]  %s0, 256, %s16, [#allocation3], 128, 128, 8
    $region5: #{tpu_custom_call.1} parent=1 // pred_fallthru
      _
    // Predicated region
    $region6: #{tpu_custom_call.1} parent=1 // pred_check
      _
    $region7: #{tpu_custom_call.1} parent=1 // pred_check_branch
      %23 = sbr.rel (0) target = $region9
    $region8: #{tpu_custom_call.1} parent=1 // pred_region
      %s25 = ssub.s32 1024, 1024
      %26 = vsyncadd [#allocation6], %s25
      %s27 = sshll.u32 [#allocation5], 4
      %s28 = int_to_ptr.vmem [resolvable:$true] %s27
      %33 = dma.hbm_to_vmem [thread:$0]  %s1, 1024, %s28, [#allocation6], 64, 64, 4
    $region9: #{tpu_custom_call.1} parent=1 // pred_fallthru
      _
    // Predicated region
    $region10: #{tpu_custom_call.1} parent=1 // pred_check
      _
    $region11: #{tpu_custom_call.1} parent=1 // pred_check_branch
      %35 = sbr.rel (0) target = $region13
    $region12: #{tpu_custom_call.1} parent=1 // pred_region
      %36 = dma.done [#allocation3], 256
    $region13: #{tpu_custom_call.1} parent=1 // pred_fallthru
      _
    // Predicated region
    $region14: #{tpu_custom_call.1} parent=1 // pred_check
      _
    $region15: #{tpu_custom_call.1} parent=1 // pred_check_branch
      %38 = sbr.rel (0) target = $region17
    $region16: #{tpu_custom_call.1} parent=1 // pred_region
      %39 = dma.done [#allocation6], 1024
    $region17: #{tpu_custom_call.1} parent=1 // pred_fallthru
      _
    %v41 = vld [vmem:[#allocation2] sm:$0xff]
    %v42 = vld [vmem:[#allocation2 + $0x8] sm:$0xff]
    %v43 = vpack.c.bf16 %v42, %v41
    %v44 = vld [vmem:[#allocation5] sm:$0xf]
    %v45 = vld [vmem:[#allocation5 + $0x4] sm:$0xf]
    %v46 = vld [vmem:[#allocation5 + $0x8] sm:$0xf]
    %v47 = vld [vmem:[#allocation5 + $0xc] sm:$0xf]
    %v48 = vld [vmem:[#allocation5 + $0x10] sm:$0xf]
    %v49 = vld [vmem:[#allocation5 + $0x14] sm:$0xf]
    %v50 = vld [vmem:[#allocation5 + $0x18] sm:$0xf]
    %v51 = vld [vmem:[#allocation5 + $0x1c] sm:$0xf]
    %v52 = vld [vmem:[#allocation5 + $0x20] sm:$0xf]
    %v53 = vld [vmem:[#allocation5 + $0x24] sm:$0xf]
    %v54 = vld [vmem:[#allocation5 + $0x28] sm:$0xf]
    %v55 = vld [vmem:[#allocation5 + $0x2c] sm:$0xf]
    %v56 = vld [vmem:[#allocation5 + $0x30] sm:$0xf]
    %v57 = vld [vmem:[#allocation5 + $0x34] sm:$0xf]
    %v58 = vld [vmem:[#allocation5 + $0x38] sm:$0xf]
    %v59 = vld [vmem:[#allocation5 + $0x3c] sm:$0xf]
    %v76 = vunpack.c.l.b16 %v44
    %v77 = vunpack.c.l.b16 %v45
    %v78 = vunpack.c.l.b16 %v46
    %v79 = vunpack.c.l.b16 %v47
    %v80 = vunpack.c.l.b16 %v48
    %v81 = vunpack.c.l.b16 %v49
    %v82 = vunpack.c.l.b16 %v50
    %v83 = vunpack.c.l.b16 %v51
    %v84 = vunpack.c.l.b16 %v52
    %v85 = vunpack.c.l.b16 %v53
    %v86 = vunpack.c.l.b16 %v54
    %v87 = vunpack.c.l.b16 %v55
    %v88 = vunpack.c.l.b16 %v56
    %v89 = vunpack.c.l.b16 %v57
    %v90 = vunpack.c.l.b16 %v58
    %v91 = vunpack.c.l.b16 %v59
    %v92 = vpack.c.b16 %v77, %v76
    %v93 = vpack.c.b16 %v79, %v78
    %v94 = vpack.c.b16 %v81, %v80
    %v95 = vpack.c.b16 %v83, %v82
    %v96 = vpack.c.b16 %v85, %v84
    %v97 = vpack.c.b16 %v87, %v86
    %v98 = vpack.c.b16 %v89, %v88
    %v99 = vpack.c.b16 %v91, %v90
    %108 = vmatprep.subr.bf16.mxu0 0
    %109 = vmatpush1.bf16.msra.mxu0 %v92
    %110 = vmatprep.subr.bf16.mxu0 0
    %111 = vmatpush1.bf16.msra.mxu0 %v93
    %112 = vmatprep.subr.bf16.mxu0 0
    %113 = vmatpush1.bf16.msra.mxu0 %v94
    %114 = vmatprep.subr.bf16.mxu0 0
    %115 = vmatpush1.bf16.msra.mxu0 %v95
    %116 = vmatprep.subr.bf16.mxu0 0
    %117 = vmatpush1.bf16.msra.mxu0 %v96
    %118 = vmatprep.subr.bf16.mxu0 0
    %119 = vmatpush1.bf16.msra.mxu0 %v97
    %120 = vmatprep.subr.bf16.mxu0 0
    %121 = vmatpush1.bf16.msra.mxu0 %v98
    %122 = vmatprep.subr.bf16.mxu0 0
    %123 = vmatpush1.bf16.msra.mxu0 %v99
    %124 = vmatprep.subr.bf16.mxu0 0
    %125 = vmatpush1.bf16.msra.mxu0 0
    %126 = vmatprep.subr.bf16.mxu0 0
    %127 = vmatpush1.bf16.msra.mxu0 0
    %128 = vmatprep.subr.bf16.mxu0 0
    %129 = vmatpush1.bf16.msra.mxu0 0
    %130 = vmatprep.subr.bf16.mxu0 0
    %131 = vmatpush1.bf16.msra.mxu0 0
    %132 = vmatprep.subr.bf16.mxu0 0
    %133 = vmatpush1.bf16.msra.mxu0 0
    %134 = vmatprep.subr.bf16.mxu0 0
    %135 = vmatpush1.bf16.msra.mxu0 0
    %136 = vmatprep.subr.bf16.mxu0 0
    %137 = vmatpush1.bf16.msra.mxu0 0
    %138 = vmatprep.subr.bf16.mxu0 0
    %139 = vmatpush1.bf16.msra.mxu0 0
    %140 = vmatprep.mubr.bf16.mxu0 0
    %141 = vmatmul.mubr.bf16.gmra.mrb[0].mxu0 %v43
    %v142 = vpop.f32.mrb[0].mxu0
    %v143 = vadd.f32 0.0, %v142
    %v144 = vpop.f32.mrb[0].mxu0
    %v145 = vpop.f32.mrb[0].mxu0
    %v146 = vadd.f32 0.0, %v145
    %v147 = vpop.f32.mrb[0].mxu0
    %148 = vdwg.mxu0
    %149 = vmax.xlane.f32.xlu0 %v143
    %v150 = vpop.xlane.xlu0 %149
    %151 = vmax.xlane.f32.xlu0 %v146
    %v152 = vpop.xlane.xlu0 %151
    %v153 = vsub.f32 %v143, %v150
    %v154 = vsub.f32 %v146, %v152
    %v155 = vmul.f32 %v153, 1.442695
    %v156 = vpow.pop %v155
    %v157 = vmul.f32 %v154, 1.442695
    %v158 = vpow.pop %v157
    %159 = vadd.xlane.f32.xlu0 %v156
    %v160 = vpop.xlane.xlu0 %159
    %161 = vadd.xlane.f32.xlu0 %v158
    %v162 = vpop.xlane.xlu0 %161
    %v163 = vlog2.pop %v160
    %v164 = vmul.f32 %v163, 0.6931472
    %v165 = vlog2.pop %v162
    %v166 = vmul.f32 %v165, 0.6931472
    %v167 = vsub.f32 %v153, %v164
    %v168 = vsub.f32 %v154, %v166
    %169 = vst [vmem:[#allocation7] sm:$0xff] %v167
    %170 = vst [vmem:[#allocation7 + $0x8] sm:$0xff] %v168
    // Predicated region
    $region18: #{tpu_custom_call.1} parent=1 // pred_check
      _
    $region19: #{tpu_custom_call.1} parent=1 // pred_check_branch
      %172 = sbr.rel (0) target = $region21
    $region20: #{tpu_custom_call.1} parent=1 // pred_region
      %s174 = ssub.s32 256, 256
      %175 = vsyncadd [#allocation4], %s174
      %s176 = sshll.u32 [#allocation7], 4
      %s177 = int_to_ptr.vmem [resolvable:$true] %s176
      %182 = dma.vmem_to_hbm [thread:$0]  %s177, 256, %s2, [#allocation4], 128, 128, 8
    $region21: #{tpu_custom_call.1} parent=1 // pred_fallthru
      _
    // Predicated region
    $region22: #{tpu_custom_call.1} parent=1 // pred_check
      _
    $region23: #{tpu_custom_call.1} parent=1 // pred_check_branch
      %184 = sbr.rel (0) target = $region25
    $region24: #{tpu_custom_call.1} parent=1 // pred_region
      %185 = dma.done [#allocation4], 256
    $region25: #{tpu_custom_call.1} parent=1 // pred_fallthru
      _
    %186 = vsyncpa [#allocation3], 1
    %187 = vsyncpa [#allocation6], 1
    %188 = vsyncpa [#allocation4], 1

</llo_original>
